<compile_context>
chip_gen: v7x
topology: tpu7x:2x2x1
jax: 0.10.0
libtpu: 0.0.40
codegen_flags: <defaults>
</compile_context>

<pallas_src>
import functools

import jax
import jax.numpy as jnp
from jax import lax
from jax.experimental import pallas as pl
from jax.experimental.pallas import tpu as pltpu


def _temporal_consistency_kernel(x_ref, proj_ref, out_ref, *,
                                 true_b, tb, seq_len, num_classes):
    # x_ref:    (TB, S*C) lane-dense block in VMEM
    # proj_ref: ((S-1)*C, S-1) 0/1 group-sum matrix (resident constant)
    # out_ref:  (1, 1) per-block partial sum in SMEM
    d_width = (seq_len - 1) * num_classes

    x = x_ref[...].astype(jnp.float32)                    # single f32 temp, lane-dense
    diff = x[:, num_classes:] - x[:, :d_width]            # x[:, t+1, :] - x[:, t, :] (flattened)
    # Per-timestep squared L2 norms via a constant 0/1 matmul on the MXU:
    # (TB, (S-1)*C) @ ((S-1)*C, S-1) -> (TB, S-1).
    sq = jnp.dot(diff * diff, proj_ref[...],
                 preferred_element_type=jnp.float32,
                 precision=lax.Precision.HIGHEST)
    norms = jnp.sqrt(sq)                                   # (TB, S-1)

    # Mask rows of the (possibly partial) last batch block instead of padding in HBM.
    row = pl.program_id(0) * tb + lax.broadcasted_iota(jnp.int32, norms.shape, 0)
    norms = jnp.where(row < true_b, norms, 0.0)

    out_ref[0, 0] = jnp.sum(norms)                         # partial SUM for this block


def temporal_consistency_loss(predictions: jax.Array,
                              weight: float = 1.0,
                              block_batch: int | None = None,
                              cast_to_bf16: bool = False) -> jax.Array:
    """predictions: (B, S, C). Returns scalar f32 loss = weight * mean(||diff_t||_2)."""
    if predictions.ndim != 3:
        # Mirrors the PyTorch early-return for non-3D inputs.
        return jnp.float32(0.0)

    B, S, C = predictions.shape
    if S < 2:
        # torch.mean over an empty tensor is NaN; we return 0.0 to stay well-defined.
        return jnp.float32(0.0)

    if cast_to_bf16 and predictions.dtype == jnp.float32:
        # Optional: halves HBM traffic on this bandwidth-bound op; accumulation
        # stays f32 in-kernel.
        predictions = predictions.astype(jnp.bfloat16)

    # Lane-dense 2D view (free for a contiguous array): minor dim becomes S*C so
    # VMEM blocks are not 128/C-times padded when C < 128.
    flat = predictions.reshape(B, S * C)
    itemsize = jnp.dtype(predictions.dtype).itemsize

    # VMEM-aware batch tile: 2 pipelined input buffers (input dtype) + f32 temps
    # (x cast, diff, diff^2), all rounded up to 128 lanes. Target ~8 MiB working
    # set -> comfortably inside a 32 MiB scoped-VMEM limit on v5e/v6e/v7x.
    lane = 128
    sc_pad = pl.cdiv(S * C, lane) * lane
    d_pad = pl.cdiv((S - 1) * C, lane) * lane
    per_row = 2 * sc_pad * itemsize + 4 * (sc_pad + 2 * d_pad)
    if block_batch is None:
        budget = 8 * 1024 * 1024
        block_batch = max(8, (budget // per_row) // 8 * 8)

    TB = min(int(block_batch), B)
    if TB < B:
        TB = max(8, (TB // 8) * 8)        # sublane-aligned partial blocks
        if TB >= B:
            TB = B                        # block dim == full array dim is always legal
    num_blocks = pl.cdiv(B, TB)

    Sm1 = S - 1
    # 0/1 matrix summing each contiguous C-lane group (one timestep) into one column.
    proj = (jnp.arange(Sm1 * C, dtype=jnp.int32)[:, None] // C
            == jnp.arange(Sm1, dtype=jnp.int32)[None, :]).astype(jnp.float32)

    kernel = functools.partial(_temporal_consistency_kernel,
                               true_b=B, tb=TB, seq_len=S, num_classes=C)

    cost = pl.CostEstimate(
        flops=int(2 * B * Sm1 * C + 2 * B * Sm1 * C * Sm1),
        transcendentals=int(B * Sm1),
        bytes_accessed=int(B * S * C * itemsize + Sm1 * C * Sm1 * 4 + num_blocks * 4),
    )

    partials = pl.pallas_call(
        kernel,
        out_shape=jax.ShapeDtypeStruct((num_blocks, 1), jnp.float32),
        grid=(num_blocks,),
        in_specs=[
            pl.BlockSpec((TB, S * C), lambda i: (i, 0)),
            pl.BlockSpec((Sm1 * C, Sm1), lambda i: (0, 0)),   # resident constant block
        ],
        out_specs=pl.BlockSpec((1, 1), lambda i: (i, 0),
                               memory_space=pltpu.MemorySpace.SMEM),
        compiler_params=pltpu.CompilerParams(
            # "parallel" is advisory (near-zero effect on single-TC gens); grid steps
            # are fully independent so it is at least semantically correct for v7x.
            dimension_semantics=("parallel",),
            vmem_limit_bytes=32 * 1024 * 1024,
        ),
        cost_estimate=cost,
    )(flat, proj)

    loss = jnp.sum(partials) / jnp.float32(B * Sm1)
    return (jnp.float32(weight) * loss).astype(jnp.float32)


def _reference(predictions: jax.Array, weight: float = 1.0) -> jax.Array:
    # Pure-JAX mirror of the PyTorch forward (for correctness check).
    if predictions.ndim != 3:
        return jnp.float32(0.0)
    p = predictions.astype(jnp.float32)
    diff = p[:, 1:] - p[:, :-1]
    norms = jnp.sqrt(jnp.sum(diff * diff, axis=-1))
    return jnp.float32(weight) * jnp.mean(norms)


if __name__ == "__main__":
    key = jax.random.PRNGKey(0)
    k1, k2, k3 = jax.random.split(key, 3)

    # Small shapes consistent with (batch, sequence_length, num_classes).
    B, S, C = 2, 8, 32
    predictions = jax.random.normal(k1, (B, S, C), dtype=jnp.float32)

    loss = temporal_consistency_loss(predictions, weight=1.0)
    jax.block_until_ready(loss)
    ref = _reference(predictions, weight=1.0)
    assert jnp.allclose(loss, ref, rtol=1e-4, atol=1e-6), (loss, ref)

    # Multi-block grid with a partial last block (B=20, TB=8) -> in-kernel row masking.
    B2, S2, C2 = 20, 8, 32
    preds2 = jax.random.normal(k2, (B2, S2, C2), dtype=jnp.float32)
    loss2 = temporal_consistency_loss(preds2, weight=0.5, block_batch=8)
    jax.block_until_ready(loss2)
    ref2 = _reference(preds2, weight=0.5)
    assert jnp.allclose(loss2, ref2, rtol=1e-4, atol=1e-6), (loss2, ref2)

    # Non-128-multiple lane width (S*C = 120) exercises the generic slice/matmul path.
    B3, S3, C3 = 3, 6, 20
    preds3 = jax.random.normal(k3, (B3, S3, C3), dtype=jnp.float32)
    loss3 = temporal_consistency_loss(preds3, weight=2.0)
    jax.block_until_ready(loss3)
    ref3 = _reference(preds3, weight=2.0)
    assert jnp.allclose(loss3, ref3, rtol=1e-4, atol=1e-6), (loss3, ref3)

    # Non-3D input mirrors the PyTorch early return of 0.0.
    assert temporal_consistency_loss(jnp.ones((4, 5), jnp.float32)) == 0.0
    # TODO(synk): S<2 returns 0.0 whereas torch.mean over an empty diff returns NaN
    # (documented semantic divergence).

    print("KERNEL_OK")
</pallas_src>

<mosaic_0001>
module attributes {stable_mosaic.version = 11 : i64} {
  func.func @_temporal_consistency_kernel(%arg0: i32, %arg1: memref<2x256xf32, #tpu.memory_space<vmem>>, %arg2: memref<224x7xf32, #tpu.memory_space<vmem>>, %arg3: memref<1x1xf32, #tpu.memory_space<smem>>) attributes {dimension_semantics = [#tpu.dimension_semantics<parallel>], iteration_bounds = array<i64: 1>, scalar_prefetch = 0 : i64, scratch_operands = 0 : i64, tpu.core_type = #tpu.core_type<tc>, window_params = [{transform_indices = @transform_0, window_bounds = array<i64: 2, 256>}, {pipeline_mode = #tpu.pipeline_mode<synchronous>, transform_indices = @transform_1, window_bounds = array<i64: 224, 7>}, {transform_indices = @transform_2, window_bounds = array<i64: 1, 1>}]} {
    %c0 = arith.constant 0 : index
    %c0_0 = arith.constant 0 : index
    %0 = vector.load %arg1[%c0, %c0_0] : memref<2x256xf32, #tpu.memory_space<vmem>>, vector<2x256xf32>
    %1 = vector.extract_strided_slice %0 {offsets = [0, 32], sizes = [2, 224], strides = [1, 1]} : vector<2x256xf32> to vector<2x224xf32>
    %2 = vector.extract_strided_slice %0 {offsets = [0, 0], sizes = [2, 224], strides = [1, 1]} : vector<2x256xf32> to vector<2x224xf32>
    %3 = arith.subf %1, %2 : vector<2x224xf32>
    %4 = arith.mulf %3, %3 : vector<2x224xf32>
    %c0_1 = arith.constant 0 : index
    %c0_2 = arith.constant 0 : index
    %5 = vector.load %arg2[%c0_1, %c0_2] : memref<224x7xf32, #tpu.memory_space<vmem>>, vector<224x7xf32>
    %cst = arith.constant dense<0.000000e+00> : vector<2x7xf32>
    %6 = tpu.matmul %4, %5, %cst {dimension_numbers = #tpu.dot_dimension_numbers<[1], [0], [0], [1], [0, 0, 1, 1], [], []>, precision = #tpu.contract_precision<fp32>} : vector<2x224xf32>, vector<224x7xf32>, vector<2x7xf32> -> vector<2x7xf32>
    %7 = math.sqrt %6 : vector<2x7xf32>
    %c2_i32 = arith.constant 2 : i32
    %8 = arith.muli %arg0, %c2_i32 : i32
    %9 = tpu.iota {dimensions = array<i32: 0>} : vector<2x7xi32>
    %10 = vector.broadcast %8 : i32 to vector<2x7xi32>
    %11 = arith.addi %10, %9 : vector<2x7xi32>
    %c2_i32_3 = arith.constant 2 : i32
    %12 = vector.broadcast %c2_i32_3 : i32 to vector<2x7xi32>
    %13 = arith.cmpi slt, %11, %12 : vector<2x7xi32>
    %cst_4 = arith.constant 0.000000e+00 : f32
    %14 = vector.broadcast %cst_4 : f32 to vector<2x7xf32>
    %15 = arith.select %13, %7, %14 : vector<2x7xi1>, vector<2x7xf32>
    %16 = vector.shape_cast %15 : vector<2x7xf32> to vector<1x2x7xf32>
    %cst_5 = arith.constant dense<0.000000e+00> : vector<1xf32>
    %17 = vector.multi_reduction <add>, %16, %cst_5 [1, 2] : vector<1x2x7xf32> to vector<1xf32>
    %18 = vector.shape_cast %17 : vector<1xf32> to vector<1x1x1xf32>
    %19 = vector.extract %18[0, 0, 0] : f32 from vector<1x1x1xf32>
    %c0_6 = arith.constant 0 : index
    %c0_7 = arith.constant 0 : index
    %20 = memref.load %arg3[%c0_6, %c0_7] : memref<1x1xf32, #tpu.memory_space<smem>>
    memref.store %19, %arg3[%c0_6, %c0_7] : memref<1x1xf32, #tpu.memory_space<smem>>
    return
  }
  func.func @transform_0(%arg0: i32) -> (i32, i32) {
    %c0_i32 = arith.constant 0 : i32
    %c0_i32_0 = arith.constant 0 : i32
    return %arg0, %c0_i32 : i32, i32
  }
  func.func @transform_1(%arg0: i32) -> (i32, i32) {
    %c0_i32 = arith.constant 0 : i32
    %c0_i32_0 = arith.constant 0 : i32
    %c0_i32_1 = arith.constant 0 : i32
    return %c0_i32, %c0_i32_0 : i32, i32
  }
  func.func @transform_2(%arg0: i32) -> (i32, i32) {
    %c0_i32 = arith.constant 0 : i32
    %c0_i32_0 = arith.constant 0 : i32
    return %arg0, %c0_i32 : i32, i32
  }
}

</mosaic_0001>

<llo_original>
// kernel: tpu_custom_call.1
$region0: #{tpu_custom_call.1}
  #allocation0 [shape = 'u32[]', space=smem, size = 0x4, offset = 0x4, fixed_abs, tag = 'smem constant byte address 0x4 - core index']
  #allocation1 [shape = 'u32[144,128]{1,0:T(1,128)}', space=vmem, size = 0x12000, scoped, tag = 'internal scratch']
  %s0 = inlined_call_operand.vmem [shape: f32[2,256], index: 0, kind: input, shape index: {}]
  %s1 = inlined_call_operand.vmem [shape: f32[224,7], index: 1, kind: input, shape index: {}]
  %s2 = inlined_call_operand.hbm [shape: f32[1,1], index: 2, kind: output, shape index: {}]
  %s3 = sld [smem:[#allocation0]]
  $region18: #{tpu_custom_call.1} parent=0
    _
  %s5 = ssub.s32 1, %s3
  %s6 = scalar_select 0, %s5, %s3
  $region1: #{tpu_custom_call.1} parent=0
    #allocation2 [shape = 'u8[512]{0}', space=smem, size = 0x200, scoped, tag = 'output window, operand 0, single buffered']
    #allocation3 [shape = 's32[1]{0}', space=sflag, size = 0x4, scoped, tag = 'scoped memory for tpu_custom_call.1']
    %7 = vsyncpa [#allocation3], 0
    // Predicated region
    $region2: #{tpu_custom_call.1} parent=1 // pred_check
      _
    $region3: #{tpu_custom_call.1} parent=1 // pred_check_branch
      %9 = sbr.rel (0) target = $region5
    $region4: #{tpu_custom_call.1} parent=1 // pred_region
      _
    $region5: #{tpu_custom_call.1} parent=1 // pred_fallthru
      _
    // Predicated region
    $region6: #{tpu_custom_call.1} parent=1 // pred_check
      _
    $region7: #{tpu_custom_call.1} parent=1 // pred_check_branch
      %11 = sbr.rel (0) target = $region9
    $region8: #{tpu_custom_call.1} parent=1 // pred_region
      _
    $region9: #{tpu_custom_call.1} parent=1 // pred_fallthru
      _
    %v12 = vld [vmem:[%s0] sm:$0xf]
    %14 = vrot.lane.b32.xlu0 %v12, 32
    %v15 = vpop.permute.xlu0 %14
    %v16 = vrot.slane %v15, 6
    %vm17 = vcmask 261120
    %v18 = vsel %vm17, %v16, %v15
    %v20 = vsub.f32 %v12, %v18
    %v21 = vmul.f32 %v20, %v20
    %v22 = vld [vmem:[%s1] sm:$0xff]
    %v23 = vld [vmem:[%s1 + $0x8] sm:$0xff]
    %v24 = vld [vmem:[%s1 + $0x10] sm:$0xff]
    %v25 = vld [vmem:[%s1 + $0x18] sm:$0xff]
    %v26 = vld [vmem:[%s1 + $0x20] sm:$0xff]
    %v27 = vld [vmem:[%s1 + $0x28] sm:$0xff]
    %v28 = vld [vmem:[%s1 + $0x30] sm:$0xff]
    %v29 = vld [vmem:[%s1 + $0x38] sm:$0xff]
    %v30 = vld [vmem:[%s1 + $0x40] sm:$0xff]
    %v31 = vld [vmem:[%s1 + $0x48] sm:$0xff]
    %v32 = vld [vmem:[%s1 + $0x50] sm:$0xff]
    %v33 = vld [vmem:[%s1 + $0x58] sm:$0xff]
    %v34 = vld [vmem:[%s1 + $0x60] sm:$0xff]
    %v35 = vld [vmem:[%s1 + $0x68] sm:$0xff]
    %v36 = vld [vmem:[%s1 + $0x70] sm:$0xff]
    %v37 = vld [vmem:[%s1 + $0x78] sm:$0xff]
    %v38 = vld [vmem:[%s1 + $0x80] sm:$0xff]
    %v39 = vld [vmem:[%s1 + $0x88] sm:$0xff]
    %v40 = vld [vmem:[%s1 + $0x90] sm:$0xff]
    %v41 = vld [vmem:[%s1 + $0x98] sm:$0xff]
    %v42 = vld [vmem:[%s1 + $0xa0] sm:$0xff]
    %v43 = vld [vmem:[%s1 + $0xa8] sm:$0xff]
    %v44 = vld [vmem:[%s1 + $0xb0] sm:$0xff]
    %v45 = vld [vmem:[%s1 + $0xb8] sm:$0xff]
    %v46 = vld [vmem:[%s1 + $0xc0] sm:$0xff]
    %v47 = vld [vmem:[%s1 + $0xc8] sm:$0xff]
    %v48 = vld [vmem:[%s1 + $0xd0] sm:$0xff]
    %v49 = vld [vmem:[%s1 + $0xd8] sm:$0xff]
    %v52 = vunpack.c.l.s4 1983009808
    %v53 = vunpack.c.0.s8 %v52
    %v54 = vlaneseq
    %v55 = vshrl.u32 %v54, 7
    %v56 = vsub.s32 %v53, %v55
    %v57 = vrot.slane %v21, %v56
    %v58 = vcombine.high %v57, %v57
    %59 = vrot.lane.b32.xlu0 %v57, 96
    %v60 = vpop.permute.xlu0 %59
    %61 = vrot.lane.b32.xlu0 %v58, 96
    %v62 = vpop.permute.xlu0 %61
    %vm63 = vcmask 785408
    %v64 = vsel %vm63, %v60, %v62
    %v66 = vsel %vm63, %v62, 0
    %68 = vmatprep.subr.mxu0 0.0
    %v69 = vand.u32 %v22, 4294901760
    %70 = vmatpush1.msra.mxu0 %v69
    %71 = vmatprep.subr.mxu0 0.0
    %v72 = vand.u32 %v23, 4294901760
    %73 = vmatpush1.msra.mxu0 %v72
    %74 = vmatprep.subr.mxu0 0.0
    %v75 = vand.u32 %v24, 4294901760
    %76 = vmatpush1.msra.mxu0 %v75
    %77 = vmatprep.subr.mxu0 0.0
    %v78 = vand.u32 %v25, 4294901760
    %79 = vmatpush1.msra.mxu0 %v78
    %80 = vmatprep.subr.mxu0 0.0
    %v81 = vand.u32 %v26, 4294901760
    %82 = vmatpush1.msra.mxu0 %v81
    %83 = vmatprep.subr.mxu0 0.0
    %v84 = vand.u32 %v27, 4294901760
    %85 = vmatpush1.msra.mxu0 %v84
    %86 = vmatprep.subr.mxu0 0.0
    %v87 = vand.u32 %v28, 4294901760
    %88 = vmatpush1.msra.mxu0 %v87
    %89 = vmatprep.subr.mxu0 0.0
    %v90 = vand.u32 %v29, 4294901760
    %91 = vmatpush1.msra.mxu0 %v90
    %92 = vmatprep.subr.mxu0 0.0
    %v93 = vand.u32 %v30, 4294901760
    %94 = vmatpush1.msra.mxu0 %v93
    %95 = vmatprep.subr.mxu0 0.0
    %v96 = vand.u32 %v31, 4294901760
    %97 = vmatpush1.msra.mxu0 %v96
    %98 = vmatprep.subr.mxu0 0.0
    %v99 = vand.u32 %v32, 4294901760
    %100 = vmatpush1.msra.mxu0 %v99
    %101 = vmatprep.subr.mxu0 0.0
    %v102 = vand.u32 %v33, 4294901760
    %103 = vmatpush1.msra.mxu0 %v102
    %104 = vmatprep.subr.mxu0 0.0
    %v105 = vand.u32 %v34, 4294901760
    %106 = vmatpush1.msra.mxu0 %v105
    %107 = vmatprep.subr.mxu0 0.0
    %v108 = vand.u32 %v35, 4294901760
    %109 = vmatpush1.msra.mxu0 %v108
    %110 = vmatprep.subr.mxu0 0.0
    %v111 = vand.u32 %v36, 4294901760
    %112 = vmatpush1.msra.mxu0 %v111
    %113 = vmatprep.subr.mxu0 0.0
    %v114 = vand.u32 %v37, 4294901760
    %115 = vmatpush1.msra.mxu0 %v114
    %116 = vmatprep.subr.mxu0 0.0
    %v117 = vand.u32 %v38, 4294901760
    %118 = vmatpush1.msra.mxu0 %v117
    %119 = vmatprep.subr.mxu0 0.0
    %v120 = vand.u32 %v39, 4294901760
    %121 = vmatpush1.msra.mxu0 %v120
    %122 = vmatprep.subr.mxu0 0.0
    %v123 = vand.u32 %v40, 4294901760
    %124 = vmatpush1.msra.mxu0 %v123
    %125 = vmatprep.subr.mxu0 0.0
    %v126 = vand.u32 %v41, 4294901760
    %127 = vmatpush1.msra.mxu0 %v126
    %128 = vmatprep.subr.mxu0 0.0
    %v129 = vand.u32 %v42, 4294901760
    %130 = vmatpush1.msra.mxu0 %v129
    %131 = vmatprep.subr.mxu0 0.0
    %v132 = vand.u32 %v43, 4294901760
    %133 = vmatpush1.msra.mxu0 %v132
    %134 = vmatprep.subr.mxu0 0.0
    %v135 = vand.u32 %v44, 4294901760
    %136 = vmatpush1.msra.mxu0 %v135
    %137 = vmatprep.subr.mxu0 0.0
    %v138 = vand.u32 %v45, 4294901760
    %139 = vmatpush1.msra.mxu0 %v138
    %140 = vmatprep.subr.mxu0 0.0
    %v141 = vand.u32 %v46, 4294901760
    %142 = vmatpush1.msra.mxu0 %v141
    %143 = vmatprep.subr.mxu0 0.0
    %v144 = vand.u32 %v47, 4294901760
    %145 = vmatpush1.msra.mxu0 %v144
    %146 = vmatprep.subr.mxu0 0.0
    %v147 = vand.u32 %v48, 4294901760
    %148 = vmatpush1.msra.mxu0 %v147
    %149 = vmatprep.subr.mxu0 0.0
    %v150 = vand.u32 %v49, 4294901760
    %151 = vmatpush1.msra.mxu0 %v150
    %152 = vmatprep.subr.mxu0 0.0
    %153 = vmatpush1.msra.mxu0 0.0
    %154 = vmatprep.subr.mxu0 0.0
    %155 = vmatpush1.msra.mxu0 0.0
    %156 = vmatprep.subr.mxu0 0.0
    %157 = vmatpush1.msra.mxu0 0.0
    %158 = vmatprep.subr.mxu0 0.0
    %159 = vmatpush1.msra.mxu0 0.0
    %v160 = vand.u32 %v66, 4294901760
    %v161 = vsub.f32 %v66, %v160
    %v162 = vand.u32 %v161, 4294901760
    %v163 = vsub.f32 %v161, %v162
    %v164 = vand.u32 %v163, 4294901760
    %165 = vmatprep.mubr.f32.mxu0 %v164
    %v166 = vand.u32 %v64, 4294901760
    %v167 = vsub.f32 %v64, %v166
    %v168 = vand.u32 %v167, 4294901760
    %v169 = vsub.f32 %v167, %v168
    %v170 = vand.u32 %v169, 4294901760
    %171 = vmatmul.mubr.f32.gmra.mrb[0].mxu0 %v170
    %v172 = vpop.f32.mrb[0].mxu0
    %v173 = vadd.f32 0.0, %v172
    %v174 = vpop.f32.mrb[0].mxu0
    %175 = vdwg.mxu0
    %176 = vmatprep.subr.mxu0 0.0
    %v177 = vand.u32 %v22, 4294901760
    %v178 = vsub.f32 %v22, %v177
    %v179 = vand.u32 %v178, 4294901760
    %v180 = vsub.f32 %v178, %v179
    %v181 = vand.u32 %v180, 4294901760
    %182 = vmatpush1.msra.mxu0 %v181
    %183 = vmatprep.subr.mxu0 0.0
    %v184 = vand.u32 %v23, 4294901760
    %v185 = vsub.f32 %v23, %v184
    %v186 = vand.u32 %v185, 4294901760
    %v187 = vsub.f32 %v185, %v186
    %v188 = vand.u32 %v187, 4294901760
    %189 = vmatpush1.msra.mxu0 %v188
    %190 = vmatprep.subr.mxu0 0.0
    %v191 = vand.u32 %v24, 4294901760
    %v192 = vsub.f32 %v24, %v191
    %v193 = vand.u32 %v192, 4294901760
    %v194 = vsub.f32 %v192, %v193
    %v195 = vand.u32 %v194, 4294901760
    %196 = vmatpush1.msra.mxu0 %v195
    %197 = vmatprep.subr.mxu0 0.0
    %v198 = vand.u32 %v25, 4294901760
    %v199 = vsub.f32 %v25, %v198
    %v200 = vand.u32 %v199, 4294901760
    %v201 = vsub.f32 %v199, %v200
    %v202 = vand.u32 %v201, 4294901760
    %203 = vmatpush1.msra.mxu0 %v202
    %204 = vmatprep.subr.mxu0 0.0
    %v205 = vand.u32 %v26, 4294901760
    %v206 = vsub.f32 %v26, %v205
    %v207 = vand.u32 %v206, 4294901760
    %v208 = vsub.f32 %v206, %v207
    %v209 = vand.u32 %v208, 4294901760
    %210 = vmatpush1.msra.mxu0 %v209
    %211 = vmatprep.subr.mxu0 0.0
    %v212 = vand.u32 %v27, 4294901760
    %v213 = vsub.f32 %v27, %v212
    %v214 = vand.u32 %v213, 4294901760
    %v215 = vsub.f32 %v213, %v214
    %v216 = vand.u32 %v215, 4294901760
    %217 = vmatpush1.msra.mxu0 %v216
    %218 = vmatprep.subr.mxu0 0.0
    %v219 = vand.u32 %v28, 4294901760
    %v220 = vsub.f32 %v28, %v219
    %v221 = vand.u32 %v220, 4294901760
    %v222 = vsub.f32 %v220, %v221
    %v223 = vand.u32 %v222, 4294901760
    %224 = vmatpush1.msra.mxu0 %v223
    %225 = vmatprep.subr.mxu0 0.0
    %v226 = vand.u32 %v29, 4294901760
    %v227 = vsub.f32 %v29, %v226
    %v228 = vand.u32 %v227, 4294901760
    %v229 = vsub.f32 %v227, %v228
    %v230 = vand.u32 %v229, 4294901760
    %231 = vmatpush1.msra.mxu0 %v230
    %232 = vmatprep.subr.mxu0 0.0
    %v233 = vand.u32 %v30, 4294901760
    %v234 = vsub.f32 %v30, %v233
    %v235 = vand.u32 %v234, 4294901760
    %v236 = vsub.f32 %v234, %v235
    %v237 = vand.u32 %v236, 4294901760
    %238 = vmatpush1.msra.mxu0 %v237
    %239 = vmatprep.subr.mxu0 0.0
    %v240 = vand.u32 %v31, 4294901760
    %v241 = vsub.f32 %v31, %v240
    %v242 = vand.u32 %v241, 4294901760
    %v243 = vsub.f32 %v241, %v242
    %v244 = vand.u32 %v243, 4294901760
    %245 = vmatpush1.msra.mxu0 %v244
    %246 = vmatprep.subr.mxu0 0.0
    %v247 = vand.u32 %v32, 4294901760
    %v248 = vsub.f32 %v32, %v247
    %v249 = vand.u32 %v248, 4294901760
    %v250 = vsub.f32 %v248, %v249
    %v251 = vand.u32 %v250, 4294901760
    %252 = vmatpush1.msra.mxu0 %v251
    %253 = vmatprep.subr.mxu0 0.0
    %v254 = vand.u32 %v33, 4294901760
    %v255 = vsub.f32 %v33, %v254
    %v256 = vand.u32 %v255, 4294901760
    %v257 = vsub.f32 %v255, %v256
    %v258 = vand.u32 %v257, 4294901760
    %259 = vmatpush1.msra.mxu0 %v258
    %260 = vmatprep.subr.mxu0 0.0
    %v261 = vand.u32 %v34, 4294901760
    %v262 = vsub.f32 %v34, %v261
    %v263 = vand.u32 %v262, 4294901760
    %v264 = vsub.f32 %v262, %v263
    %v265 = vand.u32 %v264, 4294901760
    %266 = vmatpush1.msra.mxu0 %v265
    %267 = vmatprep.subr.mxu0 0.0
    %v268 = vand.u32 %v35, 4294901760
    %v269 = vsub.f32 %v35, %v268
    %v270 = vand.u32 %v269, 4294901760
    %v271 = vsub.f32 %v269, %v270
    %v272 = vand.u32 %v271, 4294901760
    %273 = vmatpush1.msra.mxu0 %v272
    %274 = vmatprep.subr.mxu0 0.0
    %v275 = vand.u32 %v36, 4294901760
    %v276 = vsub.f32 %v36, %v275
    %v277 = vand.u32 %v276, 4294901760
    %v278 = vsub.f32 %v276, %v277
    %v279 = vand.u32 %v278, 4294901760
    %280 = vmatpush1.msra.mxu0 %v279
    %281 = vmatprep.subr.mxu0 0.0
    %v282 = vand.u32 %v37, 4294901760
    %v283 = vsub.f32 %v37, %v282
    %v284 = vand.u32 %v283, 4294901760
    %v285 = vsub.f32 %v283, %v284
    %v286 = vand.u32 %v285, 4294901760
    %287 = vmatpush1.msra.mxu0 %v286
    %288 = vmatprep.subr.mxu0 0.0
    %v289 = vand.u32 %v38, 4294901760
    %v290 = vsub.f32 %v38, %v289
    %v291 = vand.u32 %v290, 4294901760
    %v292 = vsub.f32 %v290, %v291
    %v293 = vand.u32 %v292, 4294901760
    %294 = vmatpush1.msra.mxu0 %v293
    %295 = vmatprep.subr.mxu0 0.0
    %v296 = vand.u32 %v39, 4294901760
    %v297 = vsub.f32 %v39, %v296
    %v298 = vand.u32 %v297, 4294901760
    %v299 = vsub.f32 %v297, %v298
    %v300 = vand.u32 %v299, 4294901760
    %301 = vmatpush1.msra.mxu0 %v300
    %302 = vmatprep.subr.mxu0 0.0
    %v303 = vand.u32 %v40, 4294901760
    %v304 = vsub.f32 %v40, %v303
    %v305 = vand.u32 %v304, 4294901760
    %v306 = vsub.f32 %v304, %v305
    %v307 = vand.u32 %v306, 4294901760
    %308 = vmatpush1.msra.mxu0 %v307
    %309 = vmatprep.subr.mxu0 0.0
    %v310 = vand.u32 %v41, 4294901760
    %v311 = vsub.f32 %v41, %v310
    %v312 = vand.u32 %v311, 4294901760
    %v313 = vsub.f32 %v311, %v312
    %v314 = vand.u32 %v313, 4294901760
    %315 = vmatpush1.msra.mxu0 %v314
    %316 = vmatprep.subr.mxu0 0.0
    %v317 = vand.u32 %v42, 4294901760
    %v318 = vsub.f32 %v42, %v317
    %v319 = vand.u32 %v318, 4294901760
    %v320 = vsub.f32 %v318, %v319
    %v321 = vand.u32 %v320, 4294901760
    %322 = vmatpush1.msra.mxu0 %v321
    %323 = vmatprep.subr.mxu0 0.0
    %v324 = vand.u32 %v43, 4294901760
    %v325 = vsub.f32 %v43, %v324
    %v326 = vand.u32 %v325, 4294901760
    %v327 = vsub.f32 %v325, %v326
    %v328 = vand.u32 %v327, 4294901760
    %329 = vmatpush1.msra.mxu0 %v328
    %330 = vmatprep.subr.mxu0 0.0
    %v331 = vand.u32 %v44, 4294901760
    %v332 = vsub.f32 %v44, %v331
    %v333 = vand.u32 %v332, 4294901760
    %v334 = vsub.f32 %v332, %v333
    %v335 = vand.u32 %v334, 4294901760
    %336 = vmatpush1.msra.mxu0 %v335
    %337 = vmatprep.subr.mxu0 0.0
    %v338 = vand.u32 %v45, 4294901760
    %v339 = vsub.f32 %v45, %v338
    %v340 = vand.u32 %v339, 4294901760
    %v341 = vsub.f32 %v339, %v340
    %v342 = vand.u32 %v341, 4294901760
    %343 = vmatpush1.msra.mxu0 %v342
    %344 = vmatprep.subr.mxu0 0.0
    %v345 = vand.u32 %v46, 4294901760
    %v346 = vsub.f32 %v46, %v345
    %v347 = vand.u32 %v346, 4294901760
    %v348 = vsub.f32 %v346, %v347
    %v349 = vand.u32 %v348, 4294901760
    %350 = vmatpush1.msra.mxu0 %v349
    %351 = vmatprep.subr.mxu0 0.0
    %v352 = vand.u32 %v47, 4294901760
    %v353 = vsub.f32 %v47, %v352
    %v354 = vand.u32 %v353, 4294901760
    %v355 = vsub.f32 %v353, %v354
    %v356 = vand.u32 %v355, 4294901760
    %357 = vmatpush1.msra.mxu0 %v356
    %358 = vmatprep.subr.mxu0 0.0
    %v359 = vand.u32 %v48, 4294901760
    %v360 = vsub.f32 %v48, %v359
    %v361 = vand.u32 %v360, 4294901760
    %v362 = vsub.f32 %v360, %v361
    %v363 = vand.u32 %v362, 4294901760
    %364 = vmatpush1.msra.mxu0 %v363
    %365 = vmatprep.subr.mxu0 0.0
    %v366 = vand.u32 %v49, 4294901760
    %v367 = vsub.f32 %v49, %v366
    %v368 = vand.u32 %v367, 4294901760
    %v369 = vsub.f32 %v367, %v368
    %v370 = vand.u32 %v369, 4294901760
    %371 = vmatpush1.msra.mxu0 %v370
    %372 = vmatprep.subr.mxu0 0.0
    %373 = vmatpush1.msra.mxu0 0.0
    %374 = vmatprep.subr.mxu0 0.0
    %375 = vmatpush1.msra.mxu0 0.0
    %376 = vmatprep.subr.mxu0 0.0
    %377 = vmatpush1.msra.mxu0 0.0
    %378 = vmatprep.subr.mxu0 0.0
    %379 = vmatpush1.msra.mxu0 0.0
    %v380 = vand.u32 %v66, 4294901760
    %381 = vmatprep.mubr.f32.mxu0 %v380
    %v382 = vand.u32 %v64, 4294901760
    %383 = vmatmul.mubr.f32.gmra.mrb[0].mxu0 %v382
    %v384 = vpop.f32.mrb[0].mxu0
    %v385 = vadd.f32 %v173, %v384
    %v386 = vpop.f32.mrb[0].mxu0
    %387 = vdwg.mxu0
    %388 = vmatprep.subr.mxu0 0.0
    %v389 = vand.u32 %v22, 4294901760
    %v390 = vsub.f32 %v22, %v389
    %391 = vmatpush1.msra.mxu0 %v390
    %392 = vmatprep.subr.mxu0 0.0
    %v393 = vand.u32 %v23, 4294901760
    %v394 = vsub.f32 %v23, %v393
    %395 = vmatpush1.msra.mxu0 %v394
    %396 = vmatprep.subr.mxu0 0.0
    %v397 = vand.u32 %v24, 4294901760
    %v398 = vsub.f32 %v24, %v397
    %399 = vmatpush1.msra.mxu0 %v398
    %400 = vmatprep.subr.mxu0 0.0
    %v401 = vand.u32 %v25, 4294901760
    %v402 = vsub.f32 %v25, %v401
    %403 = vmatpush1.msra.mxu0 %v402
    %404 = vmatprep.subr.mxu0 0.0
    %v405 = vand.u32 %v26, 4294901760
    %v406 = vsub.f32 %v26, %v405
    %407 = vmatpush1.msra.mxu0 %v406
    %408 = vmatprep.subr.mxu0 0.0
    %v409 = vand.u32 %v27, 4294901760
    %v410 = vsub.f32 %v27, %v409
    %411 = vmatpush1.msra.mxu0 %v410
    %412 = vmatprep.subr.mxu0 0.0
    %v413 = vand.u32 %v28, 4294901760
    %v414 = vsub.f32 %v28, %v413
    %415 = vmatpush1.msra.mxu0 %v414
    %416 = vmatprep.subr.mxu0 0.0
    %v417 = vand.u32 %v29, 4294901760
    %v418 = vsub.f32 %v29, %v417
    %419 = vmatpush1.msra.mxu0 %v418
    %420 = vmatprep.subr.mxu0 0.0
    %v421 = vand.u32 %v30, 4294901760
    %v422 = vsub.f32 %v30, %v421
    %423 = vmatpush1.msra.mxu0 %v422
    %424 = vmatprep.subr.mxu0 0.0
    %v425 = vand.u32 %v31, 4294901760
    %v426 = vsub.f32 %v31, %v425
    %427 = vmatpush1.msra.mxu0 %v426
    %428 = vmatprep.subr.mxu0 0.0
    %v429 = vand.u32 %v32, 4294901760
    %v430 = vsub.f32 %v32, %v429
    %431 = vmatpush1.msra.mxu0 %v430
    %432 = vmatprep.subr.mxu0 0.0
    %v433 = vand.u32 %v33, 4294901760
    %v434 = vsub.f32 %v33, %v433
    %435 = vmatpush1.msra.mxu0 %v434
    %436 = vmatprep.subr.mxu0 0.0
    %v437 = vand.u32 %v34, 4294901760
    %v438 = vsub.f32 %v34, %v437
    %439 = vmatpush1.msra.mxu0 %v438
    %440 = vmatprep.subr.mxu0 0.0
    %v441 = vand.u32 %v35, 4294901760
    %v442 = vsub.f32 %v35, %v441
    %443 = vmatpush1.msra.mxu0 %v442
    %444 = vmatprep.subr.mxu0 0.0
    %v445 = vand.u32 %v36, 4294901760
    %v446 = vsub.f32 %v36, %v445
    %447 = vmatpush1.msra.mxu0 %v446
    %448 = vmatprep.subr.mxu0 0.0
    %v449 = vand.u32 %v37, 4294901760
    %v450 = vsub.f32 %v37, %v449
    %451 = vmatpush1.msra.mxu0 %v450
    %452 = vmatprep.subr.mxu0 0.0
    %v453 = vand.u32 %v38, 4294901760
    %v454 = vsub.f32 %v38, %v453
    %455 = vmatpush1.msra.mxu0 %v454
    %456 = vmatprep.subr.mxu0 0.0
    %v457 = vand.u32 %v39, 4294901760
    %v458 = vsub.f32 %v39, %v457
    %459 = vmatpush1.msra.mxu0 %v458
    %460 = vmatprep.subr.mxu0 0.0
    %v461 = vand.u32 %v40, 4294901760
    %v462 = vsub.f32 %v40, %v461
    %463 = vmatpush1.msra.mxu0 %v462
    %464 = vmatprep.subr.mxu0 0.0
    %v465 = vand.u32 %v41, 4294901760
    %v466 = vsub.f32 %v41, %v465
    %467 = vmatpush1.msra.mxu0 %v466
    %468 = vmatprep.subr.mxu0 0.0
    %v469 = vand.u32 %v42, 4294901760
    %v470 = vsub.f32 %v42, %v469
    %471 = vmatpush1.msra.mxu0 %v470
    %472 = vmatprep.subr.mxu0 0.0
    %v473 = vand.u32 %v43, 4294901760
    %v474 = vsub.f32 %v43, %v473
    %475 = vmatpush1.msra.mxu0 %v474
    %476 = vmatprep.subr.mxu0 0.0
    %v477 = vand.u32 %v44, 4294901760
    %v478 = vsub.f32 %v44, %v477
    %479 = vmatpush1.msra.mxu0 %v478
    %480 = vmatprep.subr.mxu0 0.0
    %v481 = vand.u32 %v45, 4294901760
    %v482 = vsub.f32 %v45, %v481
    %483 = vmatpush1.msra.mxu0 %v482
    %484 = vmatprep.subr.mxu0 0.0
    %v485 = vand.u32 %v46, 4294901760
    %v486 = vsub.f32 %v46, %v485
    %487 = vmatpush1.msra.mxu0 %v486
    %488 = vmatprep.subr.mxu0 0.0
    %v489 = vand.u32 %v47, 4294901760
    %v490 = vsub.f32 %v47, %v489
    %491 = vmatpush1.msra.mxu0 %v490
    %492 = vmatprep.subr.mxu0 0.0
    %v493 = vand.u32 %v48, 4294901760
    %v494 = vsub.f32 %v48, %v493
    %495 = vmatpush1.msra.mxu0 %v494
    %496 = vmatprep.subr.mxu0 0.0
    %v497 = vand.u32 %v49, 4294901760
    %v498 = vsub.f32 %v49, %v497
    %499 = vmatpush1.msra.mxu0 %v498
    %500 = vmatprep.subr.mxu0 0.0
    %501 = vmatpush1.msra.mxu0 0.0
    %502 = vmatprep.subr.mxu0 0.0
    %503 = vmatpush1.msra.mxu0 0.0
    %504 = vmatprep.subr.mxu0 0.0
    %505 = vmatpush1.msra.mxu0 0.0
    %506 = vmatprep.subr.mxu0 0.0
    %507 = vmatpush1.msra.mxu0 0.0
    %v508 = vand.u32 %v66, 4294901760
    %v509 = vsub.f32 %v66, %v508
    %510 = vmatprep.mubr.f32.mxu0 %v509
    %v511 = vand.u32 %v64, 4294901760
    %v512 = vsub.f32 %v64, %v511
    %513 = vmatmul.mubr.f32.gmra.mrb[0].mxu0 %v512
    %v514 = vpop.f32.mrb[0].mxu0
    %v515 = vadd.f32 %v385, %v514
    %v516 = vpop.f32.mrb[0].mxu0
    %517 = vdwg.mxu0
    %518 = vmatprep.subr.mxu0 0.0
    %v519 = vand.u32 %v22, 4294901760
    %520 = vmatpush1.msra.mxu0 %v519
    %521 = vmatprep.subr.mxu0 0.0
    %v522 = vand.u32 %v23, 4294901760
    %523 = vmatpush1.msra.mxu0 %v522
    %524 = vmatprep.subr.mxu0 0.0
    %v525 = vand.u32 %v24, 4294901760
    %526 = vmatpush1.msra.mxu0 %v525
    %527 = vmatprep.subr.mxu0 0.0
    %v528 = vand.u32 %v25, 4294901760
    %529 = vmatpush1.msra.mxu0 %v528
    %530 = vmatprep.subr.mxu0 0.0
    %v531 = vand.u32 %v26, 4294901760
    %532 = vmatpush1.msra.mxu0 %v531
    %533 = vmatprep.subr.mxu0 0.0
    %v534 = vand.u32 %v27, 4294901760
    %535 = vmatpush1.msra.mxu0 %v534
    %536 = vmatprep.subr.mxu0 0.0
    %v537 = vand.u32 %v28, 4294901760
    %538 = vmatpush1.msra.mxu0 %v537
    %539 = vmatprep.subr.mxu0 0.0
    %v540 = vand.u32 %v29, 4294901760
    %541 = vmatpush1.msra.mxu0 %v540
    %542 = vmatprep.subr.mxu0 0.0
    %v543 = vand.u32 %v30, 4294901760
    %544 = vmatpush1.msra.mxu0 %v543
    %545 = vmatprep.subr.mxu0 0.0
    %v546 = vand.u32 %v31, 4294901760
    %547 = vmatpush1.msra.mxu0 %v546
    %548 = vmatprep.subr.mxu0 0.0
    %v549 = vand.u32 %v32, 4294901760
    %550 = vmatpush1.msra.mxu0 %v549
    %551 = vmatprep.subr.mxu0 0.0
    %v552 = vand.u32 %v33, 4294901760
    %553 = vmatpush1.msra.mxu0 %v552
    %554 = vmatprep.subr.mxu0 0.0
    %v555 = vand.u32 %v34, 4294901760
    %556 = vmatpush1.msra.mxu0 %v555
    %557 = vmatprep.subr.mxu0 0.0
    %v558 = vand.u32 %v35, 4294901760
    %559 = vmatpush1.msra.mxu0 %v558
    %560 = vmatprep.subr.mxu0 0.0
    %v561 = vand.u32 %v36, 4294901760
    %562 = vmatpush1.msra.mxu0 %v561
    %563 = vmatprep.subr.mxu0 0.0
    %v564 = vand.u32 %v37, 4294901760
    %565 = vmatpush1.msra.mxu0 %v564
    %566 = vmatprep.subr.mxu0 0.0
    %v567 = vand.u32 %v38, 4294901760
    %568 = vmatpush1.msra.mxu0 %v567
    %569 = vmatprep.subr.mxu0 0.0
    %v570 = vand.u32 %v39, 4294901760
    %571 = vmatpush1.msra.mxu0 %v570
    %572 = vmatprep.subr.mxu0 0.0
    %v573 = vand.u32 %v40, 4294901760
    %574 = vmatpush1.msra.mxu0 %v573
    %575 = vmatprep.subr.mxu0 0.0
    %v576 = vand.u32 %v41, 4294901760
    %577 = vmatpush1.msra.mxu0 %v576
    %578 = vmatprep.subr.mxu0 0.0
    %v579 = vand.u32 %v42, 4294901760
    %580 = vmatpush1.msra.mxu0 %v579
    %581 = vmatprep.subr.mxu0 0.0
    %v582 = vand.u32 %v43, 4294901760
    %583 = vmatpush1.msra.mxu0 %v582
    %584 = vmatprep.subr.mxu0 0.0
    %v585 = vand.u32 %v44, 4294901760
    %586 = vmatpush1.msra.mxu0 %v585
    %587 = vmatprep.subr.mxu0 0.0
    %v588 = vand.u32 %v45, 4294901760
    %589 = vmatpush1.msra.mxu0 %v588
    %590 = vmatprep.subr.mxu0 0.0
    %v591 = vand.u32 %v46, 4294901760
    %592 = vmatpush1.msra.mxu0 %v591
    %593 = vmatprep.subr.mxu0 0.0
    %v594 = vand.u32 %v47, 4294901760
    %595 = vmatpush1.msra.mxu0 %v594
    %596 = vmatprep.subr.mxu0 0.0
    %v597 = vand.u32 %v48, 4294901760
    %598 = vmatpush1.msra.mxu0 %v597
    %599 = vmatprep.subr.mxu0 0.0
    %v600 = vand.u32 %v49, 4294901760
    %601 = vmatpush1.msra.mxu0 %v600
    %602 = vmatprep.subr.mxu0 0.0
    %603 = vmatpush1.msra.mxu0 0.0
    %604 = vmatprep.subr.mxu0 0.0
    %605 = vmatpush1.msra.mxu0 0.0
    %606 = vmatprep.subr.mxu0 0.0
    %607 = vmatpush1.msra.mxu0 0.0
    %608 = vmatprep.subr.mxu0 0.0
    %609 = vmatpush1.msra.mxu0 0.0
    %v610 = vand.u32 %v66, 4294901760
    %v611 = vsub.f32 %v66, %v610
    %v612 = vand.u32 %v611, 4294901760
    %613 = vmatprep.mubr.f32.mxu0 %v612
    %v614 = vand.u32 %v64, 4294901760
    %v615 = vsub.f32 %v64, %v614
    %v616 = vand.u32 %v615, 4294901760
    %617 = vmatmul.mubr.f32.gmra.mrb[0].mxu0 %v616
    %v618 = vpop.f32.mrb[0].mxu0
    %v619 = vadd.f32 %v515, %v618
    %v620 = vpop.f32.mrb[0].mxu0
    %621 = vdwg.mxu0
    %622 = vmatprep.subr.mxu0 0.0
    %v623 = vand.u32 %v22, 4294901760
    %v624 = vsub.f32 %v22, %v623
    %v625 = vand.u32 %v624, 4294901760
    %626 = vmatpush1.msra.mxu0 %v625
    %627 = vmatprep.subr.mxu0 0.0
    %v628 = vand.u32 %v23, 4294901760
    %v629 = vsub.f32 %v23, %v628
    %v630 = vand.u32 %v629, 4294901760
    %631 = vmatpush1.msra.mxu0 %v630
    %632 = vmatprep.subr.mxu0 0.0
    %v633 = vand.u32 %v24, 4294901760
    %v634 = vsub.f32 %v24, %v633
    %v635 = vand.u32 %v634, 4294901760
    %636 = vmatpush1.msra.mxu0 %v635
    %637 = vmatprep.subr.mxu0 0.0
    %v638 = vand.u32 %v25, 4294901760
    %v639 = vsub.f32 %v25, %v638
    %v640 = vand.u32 %v639, 4294901760
    %641 = vmatpush1.msra.mxu0 %v640
    %642 = vmatprep.subr.mxu0 0.0
    %v643 = vand.u32 %v26, 4294901760
    %v644 = vsub.f32 %v26, %v643
    %v645 = vand.u32 %v644, 4294901760
    %646 = vmatpush1.msra.mxu0 %v645
    %647 = vmatprep.subr.mxu0 0.0
    %v648 = vand.u32 %v27, 4294901760
    %v649 = vsub.f32 %v27, %v648
    %v650 = vand.u32 %v649, 4294901760
    %651 = vmatpush1.msra.mxu0 %v650
    %652 = vmatprep.subr.mxu0 0.0
    %v653 = vand.u32 %v28, 4294901760
    %v654 = vsub.f32 %v28, %v653
    %v655 = vand.u32 %v654, 4294901760
    %656 = vmatpush1.msra.mxu0 %v655
    %657 = vmatprep.subr.mxu0 0.0
    %v658 = vand.u32 %v29, 4294901760
    %v659 = vsub.f32 %v29, %v658
    %v660 = vand.u32 %v659, 4294901760
    %661 = vmatpush1.msra.mxu0 %v660
    %662 = vmatprep.subr.mxu0 0.0
    %v663 = vand.u32 %v30, 4294901760
    %v664 = vsub.f32 %v30, %v663
    %v665 = vand.u32 %v664, 4294901760
    %666 = vmatpush1.msra.mxu0 %v665
    %667 = vmatprep.subr.mxu0 0.0
    %v668 = vand.u32 %v31, 4294901760
    %v669 = vsub.f32 %v31, %v668
    %v670 = vand.u32 %v669, 4294901760
    %671 = vmatpush1.msra.mxu0 %v670
    %672 = vmatprep.subr.mxu0 0.0
    %v673 = vand.u32 %v32, 4294901760
    %v674 = vsub.f32 %v32, %v673
    %v675 = vand.u32 %v674, 4294901760
    %676 = vmatpush1.msra.mxu0 %v675
    %677 = vmatprep.subr.mxu0 0.0
    %v678 = vand.u32 %v33, 4294901760
    %v679 = vsub.f32 %v33, %v678
    %v680 = vand.u32 %v679, 4294901760
    %681 = vmatpush1.msra.mxu0 %v680
    %682 = vmatprep.subr.mxu0 0.0
    %v683 = vand.u32 %v34, 4294901760
    %v684 = vsub.f32 %v34, %v683
    %v685 = vand.u32 %v684, 4294901760
    %686 = vmatpush1.msra.mxu0 %v685
    %687 = vmatprep.subr.mxu0 0.0
    %v688 = vand.u32 %v35, 4294901760
    %v689 = vsub.f32 %v35, %v688
    %v690 = vand.u32 %v689, 4294901760
    %691 = vmatpush1.msra.mxu0 %v690
    %692 = vmatprep.subr.mxu0 0.0
    %v693 = vand.u32 %v36, 4294901760
    %v694 = vsub.f32 %v36, %v693
    %v695 = vand.u32 %v694, 4294901760
    %696 = vmatpush1.msra.mxu0 %v695
    %697 = vmatprep.subr.mxu0 0.0
    %v698 = vand.u32 %v37, 4294901760
    %v699 = vsub.f32 %v37, %v698
    %v700 = vand.u32 %v699, 4294901760
    %701 = vmatpush1.msra.mxu0 %v700
    %702 = vmatprep.subr.mxu0 0.0
    %v703 = vand.u32 %v38, 4294901760
    %v704 = vsub.f32 %v38, %v703
    %v705 = vand.u32 %v704, 4294901760
    %706 = vmatpush1.msra.mxu0 %v705
    %707 = vmatprep.subr.mxu0 0.0
    %v708 = vand.u32 %v39, 4294901760
    %v709 = vsub.f32 %v39, %v708
    %v710 = vand.u32 %v709, 4294901760
    %711 = vmatpush1.msra.mxu0 %v710
    %712 = vmatprep.subr.mxu0 0.0
    %v713 = vand.u32 %v40, 4294901760
    %v714 = vsub.f32 %v40, %v713
    %v715 = vand.u32 %v714, 4294901760
    %716 = vmatpush1.msra.mxu0 %v715
    %717 = vmatprep.subr.mxu0 0.0
    %v718 = vand.u32 %v41, 4294901760
    %v719 = vsub.f32 %v41, %v718
    %v720 = vand.u32 %v719, 4294901760
    %721 = vmatpush1.msra.mxu0 %v720
    %722 = vmatprep.subr.mxu0 0.0
    %v723 = vand.u32 %v42, 4294901760
    %v724 = vsub.f32 %v42, %v723
    %v725 = vand.u32 %v724, 4294901760
    %726 = vmatpush1.msra.mxu0 %v725
    %727 = vmatprep.subr.mxu0 0.0
    %v728 = vand.u32 %v43, 4294901760
    %v729 = vsub.f32 %v43, %v728
    %v730 = vand.u32 %v729, 4294901760
    %731 = vmatpush1.msra.mxu0 %v730
    %732 = vmatprep.subr.mxu0 0.0
    %v733 = vand.u32 %v44, 4294901760
    %v734 = vsub.f32 %v44, %v733
    %v735 = vand.u32 %v734, 4294901760
    %736 = vmatpush1.msra.mxu0 %v735
    %737 = vmatprep.subr.mxu0 0.0
    %v738 = vand.u32 %v45, 4294901760
    %v739 = vsub.f32 %v45, %v738
    %v740 = vand.u32 %v739, 4294901760
    %741 = vmatpush1.msra.mxu0 %v740
    %742 = vmatprep.subr.mxu0 0.0
    %v743 = vand.u32 %v46, 4294901760
    %v744 = vsub.f32 %v46, %v743
    %v745 = vand.u32 %v744, 4294901760
    %746 = vmatpush1.msra.mxu0 %v745
    %747 = vmatprep.subr.mxu0 0.0
    %v748 = vand.u32 %v47, 4294901760
    %v749 = vsub.f32 %v47, %v748
    %v750 = vand.u32 %v749, 4294901760
    %751 = vmatpush1.msra.mxu0 %v750
    %752 = vmatprep.subr.mxu0 0.0
    %v753 = vand.u32 %v48, 4294901760
    %v754 = vsub.f32 %v48, %v753
    %v755 = vand.u32 %v754, 4294901760
    %756 = vmatpush1.msra.mxu0 %v755
    %757 = vmatprep.subr.mxu0 0.0
    %v758 = vand.u32 %v49, 4294901760
    %v759 = vsub.f32 %v49, %v758
    %v760 = vand.u32 %v759, 4294901760
    %761 = vmatpush1.msra.mxu0 %v760
    %762 = vmatprep.subr.mxu0 0.0
    %763 = vmatpush1.msra.mxu0 0.0
    %764 = vmatprep.subr.mxu0 0.0
    %765 = vmatpush1.msra.mxu0 0.0
    %766 = vmatprep.subr.mxu0 0.0
    %767 = vmatpush1.msra.mxu0 0.0
    %768 = vmatprep.subr.mxu0 0.0
    %769 = vmatpush1.msra.mxu0 0.0
    %v770 = vand.u32 %v66, 4294901760
    %771 = vmatprep.mubr.f32.mxu0 %v770
    %v772 = vand.u32 %v64, 4294901760
    %773 = vmatmul.mubr.f32.gmra.mrb[0].mxu0 %v772
    %v774 = vpop.f32.mrb[0].mxu0
    %v775 = vadd.f32 %v619, %v774
    %v776 = vpop.f32.mrb[0].mxu0
    %777 = vdwg.mxu0
    %778 = vmatprep.subr.mxu0 0.0
    %v779 = vand.u32 %v22, 4294901760
    %780 = vmatpush1.msra.mxu0 %v779
    %781 = vmatprep.subr.mxu0 0.0
    %v782 = vand.u32 %v23, 4294901760
    %783 = vmatpush1.msra.mxu0 %v782
    %784 = vmatprep.subr.mxu0 0.0
    %v785 = vand.u32 %v24, 4294901760
    %786 = vmatpush1.msra.mxu0 %v785
    %787 = vmatprep.subr.mxu0 0.0
    %v788 = vand.u32 %v25, 4294901760
    %789 = vmatpush1.msra.mxu0 %v788
    %790 = vmatprep.subr.mxu0 0.0
    %v791 = vand.u32 %v26, 4294901760
    %792 = vmatpush1.msra.mxu0 %v791
    %793 = vmatprep.subr.mxu0 0.0
    %v794 = vand.u32 %v27, 4294901760
    %795 = vmatpush1.msra.mxu0 %v794
    %796 = vmatprep.subr.mxu0 0.0
    %v797 = vand.u32 %v28, 4294901760
    %798 = vmatpush1.msra.mxu0 %v797
    %799 = vmatprep.subr.mxu0 0.0
    %v800 = vand.u32 %v29, 4294901760
    %801 = vmatpush1.msra.mxu0 %v800
    %802 = vmatprep.subr.mxu0 0.0
    %v803 = vand.u32 %v30, 4294901760
    %804 = vmatpush1.msra.mxu0 %v803
    %805 = vmatprep.subr.mxu0 0.0
    %v806 = vand.u32 %v31, 4294901760
    %807 = vmatpush1.msra.mxu0 %v806
    %808 = vmatprep.subr.mxu0 0.0
    %v809 = vand.u32 %v32, 4294901760
    %810 = vmatpush1.msra.mxu0 %v809
    %811 = vmatprep.subr.mxu0 0.0
    %v812 = vand.u32 %v33, 4294901760
    %813 = vmatpush1.msra.mxu0 %v812
    %814 = vmatprep.subr.mxu0 0.0
    %v815 = vand.u32 %v34, 4294901760
    %816 = vmatpush1.msra.mxu0 %v815
    %817 = vmatprep.subr.mxu0 0.0
    %v818 = vand.u32 %v35, 4294901760
    %819 = vmatpush1.msra.mxu0 %v818
    %820 = vmatprep.subr.mxu0 0.0
    %v821 = vand.u32 %v36, 4294901760
    %822 = vmatpush1.msra.mxu0 %v821
    %823 = vmatprep.subr.mxu0 0.0
    %v824 = vand.u32 %v37, 4294901760
    %825 = vmatpush1.msra.mxu0 %v824
    %826 = vmatprep.subr.mxu0 0.0
    %v827 = vand.u32 %v38, 4294901760
    %828 = vmatpush1.msra.mxu0 %v827
    %829 = vmatprep.subr.mxu0 0.0
    %v830 = vand.u32 %v39, 4294901760
    %831 = vmatpush1.msra.mxu0 %v830
    %832 = vmatprep.subr.mxu0 0.0
    %v833 = vand.u32 %v40, 4294901760
    %834 = vmatpush1.msra.mxu0 %v833
    %835 = vmatprep.subr.mxu0 0.0
    %v836 = vand.u32 %v41, 4294901760
    %837 = vmatpush1.msra.mxu0 %v836
    %838 = vmatprep.subr.mxu0 0.0
    %v839 = vand.u32 %v42, 4294901760
    %840 = vmatpush1.msra.mxu0 %v839
    %841 = vmatprep.subr.mxu0 0.0
    %v842 = vand.u32 %v43, 4294901760
    %843 = vmatpush1.msra.mxu0 %v842
    %844 = vmatprep.subr.mxu0 0.0
    %v845 = vand.u32 %v44, 4294901760
    %846 = vmatpush1.msra.mxu0 %v845
    %847 = vmatprep.subr.mxu0 0.0
    %v848 = vand.u32 %v45, 4294901760
    %849 = vmatpush1.msra.mxu0 %v848
    %850 = vmatprep.subr.mxu0 0.0
    %v851 = vand.u32 %v46, 4294901760
    %852 = vmatpush1.msra.mxu0 %v851
    %853 = vmatprep.subr.mxu0 0.0
    %v854 = vand.u32 %v47, 4294901760
    %855 = vmatpush1.msra.mxu0 %v854
    %856 = vmatprep.subr.mxu0 0.0
    %v857 = vand.u32 %v48, 4294901760
    %858 = vmatpush1.msra.mxu0 %v857
    %859 = vmatprep.subr.mxu0 0.0
    %v860 = vand.u32 %v49, 4294901760
    %861 = vmatpush1.msra.mxu0 %v860
    %862 = vmatprep.subr.mxu0 0.0
    %863 = vmatpush1.msra.mxu0 0.0
    %864 = vmatprep.subr.mxu0 0.0
    %865 = vmatpush1.msra.mxu0 0.0
    %866 = vmatprep.subr.mxu0 0.0
    %867 = vmatpush1.msra.mxu0 0.0
    %868 = vmatprep.subr.mxu0 0.0
    %869 = vmatpush1.msra.mxu0 0.0
    %v870 = vand.u32 %v66, 4294901760
    %871 = vmatprep.mubr.f32.mxu0 %v870
    %v872 = vand.u32 %v64, 4294901760
    %873 = vmatmul.mubr.f32.gmra.mrb[0].mxu0 %v872
    %v874 = vpop.f32.mrb[0].mxu0
    %v875 = vadd.f32 %v775, %v874
    %v876 = vpop.f32.mrb[0].mxu0
    %877 = vdwg.mxu0
    %v878 = vrsqrt.pop %v875
    %v879 = vmul.f32 %v875, %v878
    %vm880 = vcmp.eq.f32.partialorder %v875, inf
    %v881 = vsel %vm880, %v875, %v879
    %vm882 = vcmp.eq.f32.partialorder %v875, 0.0
    %v883 = vand.u32 %v875, 2147483648
    %v884 = vsel %vm882, %v883, %v881
    %s885 = smul.u32 0, 2
    %v886 = vlaneseq
    %v887 = vshrl.u32 %v886, 7
    %v888 = vstv %s885
    %v889 = vadd.s32 %v888, %v887
    %vm890 = vcmp.lt.s32.totalorder %v889, 2
    %v891 = vsel %vm890, %v884, 0.0
    %vm892 = vcmask 50176
    %v893 = vsel %vm892, %v891, 0.0
    %894 = vadd.xlane.f32.xlu0 %v893
    %v895 = vpop.xlane.xlu0 %894
    %v896 = vrot.slane %v895, 4
    %v897 = vadd.f32 %v895, %v896
    %v898 = vrot.slane %v897, 2
    %v899 = vadd.f32 %v897, %v898
    %v900 = vrot.slane %v899, 1
    %v901 = vadd.f32 %v899, %v900
    %s902 = vtos %v901
    %s903 = scalar_lea.smem [#allocation2], 0
    %904 = sst [smem:[%s903]] %s902
    // Predicated region
    $region10: #{tpu_custom_call.1} parent=1 // pred_check
      _
    $region11: #{tpu_custom_call.1} parent=1 // pred_check_branch
      %906 = sbr.rel (0) target = $region13
    $region12: #{tpu_custom_call.1} parent=1 // pred_region
      %s908 = ssub.s32 16, 16
      %909 = vsyncadd [#allocation3], %s908
      %912 = dma.smem_to_hbm [#allocation2], 16, %s2, [#allocation3]
    $region13: #{tpu_custom_call.1} parent=1 // pred_fallthru
      _
    // Predicated region
    $region14: #{tpu_custom_call.1} parent=1 // pred_check
      _
    $region15: #{tpu_custom_call.1} parent=1 // pred_check_branch
      %914 = sbr.rel (0) target = $region17
    $region16: #{tpu_custom_call.1} parent=1 // pred_region
      %915 = dma.done [#allocation3], 16
    $region17: #{tpu_custom_call.1} parent=1 // pred_fallthru
      _
    %916 = sfence
    %917 = vsyncpa [#allocation3], 1

</llo_original>
